<compile_context>
chip_gen: v6e
topology: v6e:2x2x1
jax: 0.10.0
libtpu: 0.0.40
codegen_flags: <defaults>
</compile_context>

<pallas_src>
from functools import partial

import jax
import jax.numpy as jnp
from jax.experimental import pallas as pl
from jax.experimental.pallas import tpu as pltpu

EPS = 1e-5      # PyTorch BatchNorm1d default
LANE = 128


def _pad_to(n, m):
    return ((n + m - 1) // m) * m


# ---------------------------------------------------------------------------
# Kernel: whole forward pass on VMEM-resident tiles, single invocation.
# ---------------------------------------------------------------------------
def feature_extractor_kernel(x_ref, w_ref, bn_ref, o_ref):
    n, f = x_ref.shape
    hp = o_ref.shape[1]
    inv_n = jnp.float32(1.0 / n)

    x = x_ref[...]                                     # (N, F) f32
    bn = bn_ref[...]                                   # (4, P) f32

    # --- BatchNorm1d(in_features): training-mode batch stats, one pass ------
    s1 = jnp.sum(x, axis=0, keepdims=True)
    q1 = jnp.sum(x * x, axis=0, keepdims=True)
    mean1 = s1 * inv_n
    var1 = jnp.maximum(q1 * inv_n - mean1 * mean1, 0.0)   # clamp -> no NaN rsqrt
    scale1 = bn[0:1, :f] * jax.lax.rsqrt(var1 + EPS)       # rsqrt rides the EUP
    shift1 = bn[1:2, :f] - mean1 * scale1
    xh = x * scale1 + shift1                                # folded BN affine

    # --- Linear(in_features, hidden): f32 MXU matmul (tiny, not MXU-bound).
    # Bias intentionally omitted: BN2's batch-mean subtraction cancels any
    # per-column constant exactly (training-mode BN only).
    y = jnp.dot(xh, w_ref[...], preferred_element_type=jnp.float32)   # (N, Hp)

    # --- BatchNorm1d(hidden): training-mode batch stats, one pass -----------
    s2 = jnp.sum(y, axis=0, keepdims=True)
    q2 = jnp.sum(y * y, axis=0, keepdims=True)
    mean2 = s2 * inv_n
    var2 = jnp.maximum(q2 * inv_n - mean2 * mean2, 0.0)
    scale2 = bn[2:3, :hp] * jax.lax.rsqrt(var2 + EPS)
    shift2 = bn[3:4, :hp] - mean2 * scale2

    # --- ReLU; Hp is a multiple of 128 -> unmasked, lane-dense store --------
    o_ref[...] = jnp.maximum(y * scale2 + shift2, 0.0)


# ---------------------------------------------------------------------------
# One-time parameter packing (hoisted out of the per-call path).
# ---------------------------------------------------------------------------
def pack_params(gamma1, beta1, w, bias, gamma2, beta2):
    """Pack module parameters for the kernel. Call ONCE per parameter set.

    w: (H, F_in) torch Linear layout. `bias` is accepted but dropped: with
    training-mode BatchNorm after the Linear, the batch-mean subtraction
    cancels any per-column constant exactly. Do NOT reuse for eval-mode BN.
    """
    del bias
    H, F_in = w.shape
    Hp = _pad_to(H, LANE)                 # lane-dense output width
    P = max(F_in, Hp)

    # W^T padded along the output dim. Padded columns are zero, padded beta2
    # is zero -> padded output columns are exactly 0 and are sliced off.
    w_t = jnp.zeros((F_in, Hp), jnp.float32).at[:, :H].set(
        w.T.astype(jnp.float32))

    bn = jnp.concatenate([
        jnp.ones((1, P), jnp.float32).at[0, :F_in].set(gamma1),
        jnp.zeros((1, P), jnp.float32).at[0, :F_in].set(beta1),
        jnp.ones((1, P), jnp.float32).at[0, :H].set(gamma2),
        jnp.zeros((1, P), jnp.float32).at[0, :H].set(beta2),
    ], axis=0)                                               # (4, P)
    return w_t, bn, H


# ---------------------------------------------------------------------------
# Per-call forward (jitted): pallas_call + one tiny output slice.
# ---------------------------------------------------------------------------
@partial(jax.jit, static_argnames=("hidden",))
def feature_extractor_fwd(x, w_t, bn, *, hidden):
    n, f_in = x.shape
    hp = w_t.shape[1]

    vmem = pl.BlockSpec(memory_space=pltpu.MemorySpace.VMEM)
    cost = pl.CostEstimate(
        flops=2 * n * f_in * hp + 10 * n * (f_in + hp),
        transcendentals=f_in + hp,
        bytes_accessed=4 * (n * f_in + f_in * hp + 4 * bn.shape[1] + n * hp),
    )

    out_p = pl.pallas_call(
        feature_extractor_kernel,
        out_shape=jax.ShapeDtypeStruct((n, hp), jnp.float32),
        in_specs=[vmem, vmem, vmem],
        out_specs=vmem,
        cost_estimate=cost,
    )(x.astype(jnp.float32), w_t, bn)

    return out_p[:, :hidden]


# ---------------------------------------------------------------------------
# Pure-JAX reference mirror of the PyTorch module (bias included, 2-pass var).
# ---------------------------------------------------------------------------
def reference(x, gamma1, beta1, w, bias, gamma2, beta2):
    mean1 = jnp.mean(x, axis=0, keepdims=True)
    var1 = jnp.mean((x - mean1) ** 2, axis=0, keepdims=True)
    xh = (x - mean1) / jnp.sqrt(var1 + EPS) * gamma1 + beta1
    y = xh @ w.T + bias
    mean2 = jnp.mean(y, axis=0, keepdims=True)
    var2 = jnp.mean((y - mean2) ** 2, axis=0, keepdims=True)
    yh = (y - mean2) / jnp.sqrt(var2 + EPS) * gamma2 + beta2
    return jnp.maximum(yh, 0.0)


if __name__ == "__main__":
    # Shapes consistent with the module: batch=8, in_features=16, hidden=32.
    N, F_in, H = 8, 16, 32

    key = jax.random.PRNGKey(0)
    kx, kw, kb, kg1, kb1, kg2, kb2 = jax.random.split(key, 7)

    x = jax.random.normal(kx, (N, F_in), dtype=jnp.float32)

    bound = 1.0 / (F_in ** 0.5)
    w = jax.random.uniform(kw, (H, F_in), jnp.float32, -bound, bound)
    bias = jax.random.uniform(kb, (H,), jnp.float32, -bound, bound)

    # Non-trivial BN affine params to exercise the folded scale/shift path.
    gamma1 = 1.0 + 0.1 * jax.random.normal(kg1, (F_in,), jnp.float32)
    beta1 = 0.1 * jax.random.normal(kb1, (F_in,), jnp.float32)
    gamma2 = 1.0 + 0.1 * jax.random.normal(kg2, (H,), jnp.float32)
    beta2 = 0.1 * jax.random.normal(kb2, (H,), jnp.float32)

    # One-time packing, then the (jitted) per-call path.
    w_t, bn, hidden = pack_params(gamma1, beta1, w, bias, gamma2, beta2)
    out = feature_extractor_fwd(x, w_t, bn, hidden=hidden)
    out = jax.block_until_ready(out)

    ref = reference(x, gamma1, beta1, w, bias, gamma2, beta2)
    assert out.shape == (N, H)
    # f32 everywhere; slack only for MXU f32 pass decomposition vs XLA dot.
    assert jnp.allclose(out, ref, atol=2e-2, rtol=2e-2), "mismatch vs reference"

    print("KERNEL_OK")
</pallas_src>

<mosaic_0001>
module attributes {stable_mosaic.version = 11 : i64} {
  func.func @feature_extractor_kernel(%arg0: memref<8x16xf32, #tpu.memory_space<vmem>>, %arg1: memref<16x128xf32, #tpu.memory_space<vmem>>, %arg2: memref<4x128xf32, #tpu.memory_space<vmem>>, %arg3: memref<8x128xf32, #tpu.memory_space<vmem>>) attributes {dimension_semantics = [], scalar_prefetch = 0 : i64, scratch_operands = 0 : i64, tpu.core_type = #tpu.core_type<tc>} {
    %c0 = arith.constant 0 : index
    %c0_0 = arith.constant 0 : index
    %0 = vector.load %arg0[%c0, %c0_0] : memref<8x16xf32, #tpu.memory_space<vmem>>, vector<8x16xf32>
    %c0_1 = arith.constant 0 : index
    %c0_2 = arith.constant 0 : index
    %1 = vector.load %arg2[%c0_1, %c0_2] : memref<4x128xf32, #tpu.memory_space<vmem>>, vector<4x128xf32>
    %cst = arith.constant dense<0.000000e+00> : vector<16xf32>
    %2 = vector.multi_reduction <add>, %0, %cst [0] : vector<8x16xf32> to vector<16xf32>
    %3 = vector.shape_cast %2 : vector<16xf32> to vector<1x16xf32>
    %4 = arith.mulf %0, %0 : vector<8x16xf32>
    %cst_3 = arith.constant dense<0.000000e+00> : vector<16xf32>
    %5 = vector.multi_reduction <add>, %4, %cst_3 [0] : vector<8x16xf32> to vector<16xf32>
    %6 = vector.shape_cast %5 : vector<16xf32> to vector<1x16xf32>
    %cst_4 = arith.constant 1.250000e-01 : f32
    %7 = vector.broadcast %cst_4 : f32 to vector<1x16xf32>
    %8 = arith.mulf %3, %7 : vector<1x16xf32>
    %cst_5 = arith.constant 1.250000e-01 : f32
    %9 = vector.broadcast %cst_5 : f32 to vector<1x16xf32>
    %10 = arith.mulf %6, %9 : vector<1x16xf32>
    %11 = arith.mulf %8, %8 : vector<1x16xf32>
    %12 = arith.subf %10, %11 : vector<1x16xf32>
    %cst_6 = arith.constant 0.000000e+00 : f32
    %13 = vector.broadcast %cst_6 : f32 to vector<1x16xf32>
    %14 = arith.maximumf %12, %13 : vector<1x16xf32>
    %15 = vector.extract_strided_slice %1 {offsets = [0, 0], sizes = [1, 16], strides = [1, 1]} : vector<4x128xf32> to vector<1x16xf32>
    %cst_7 = arith.constant 9.99999974E-6 : f32
    %16 = vector.broadcast %cst_7 : f32 to vector<1x16xf32>
    %17 = arith.addf %14, %16 : vector<1x16xf32>
    %18 = math.rsqrt %17 : vector<1x16xf32>
    %19 = arith.mulf %15, %18 : vector<1x16xf32>
    %20 = vector.extract_strided_slice %1 {offsets = [1, 0], sizes = [1, 16], strides = [1, 1]} : vector<4x128xf32> to vector<1x16xf32>
    %21 = arith.mulf %8, %19 : vector<1x16xf32>
    %22 = arith.subf %20, %21 : vector<1x16xf32>
    %23 = vector.broadcast %19 : vector<1x16xf32> to vector<8x16xf32>
    %24 = arith.mulf %0, %23 : vector<8x16xf32>
    %25 = vector.broadcast %22 : vector<1x16xf32> to vector<8x16xf32>
    %26 = arith.addf %24, %25 : vector<8x16xf32>
    %c0_8 = arith.constant 0 : index
    %c0_9 = arith.constant 0 : index
    %27 = vector.load %arg1[%c0_8, %c0_9] : memref<16x128xf32, #tpu.memory_space<vmem>>, vector<16x128xf32>
    %cst_10 = arith.constant dense<0.000000e+00> : vector<8x128xf32>
    %28 = tpu.matmul %26, %27, %cst_10 {dimension_numbers = #tpu.dot_dimension_numbers<[1], [0], [0], [1], [0, 0, 1, 1], [], []>} : vector<8x16xf32>, vector<16x128xf32>, vector<8x128xf32> -> vector<8x128xf32>
    %cst_11 = arith.constant dense<0.000000e+00> : vector<128xf32>
    %29 = vector.multi_reduction <add>, %28, %cst_11 [0] : vector<8x128xf32> to vector<128xf32>
    %30 = vector.shape_cast %29 : vector<128xf32> to vector<1x128xf32>
    %31 = arith.mulf %28, %28 : vector<8x128xf32>
    %cst_12 = arith.constant dense<0.000000e+00> : vector<128xf32>
    %32 = vector.multi_reduction <add>, %31, %cst_12 [0] : vector<8x128xf32> to vector<128xf32>
    %33 = vector.shape_cast %32 : vector<128xf32> to vector<1x128xf32>
    %cst_13 = arith.constant 1.250000e-01 : f32
    %34 = vector.broadcast %cst_13 : f32 to vector<1x128xf32>
    %35 = arith.mulf %30, %34 : vector<1x128xf32>
    %cst_14 = arith.constant 1.250000e-01 : f32
    %36 = vector.broadcast %cst_14 : f32 to vector<1x128xf32>
    %37 = arith.mulf %33, %36 : vector<1x128xf32>
    %38 = arith.mulf %35, %35 : vector<1x128xf32>
    %39 = arith.subf %37, %38 : vector<1x128xf32>
    %cst_15 = arith.constant 0.000000e+00 : f32
    %40 = vector.broadcast %cst_15 : f32 to vector<1x128xf32>
    %41 = arith.maximumf %39, %40 : vector<1x128xf32>
    %42 = vector.extract_strided_slice %1 {offsets = [2, 0], sizes = [1, 128], strides = [1, 1]} : vector<4x128xf32> to vector<1x128xf32>
    %cst_16 = arith.constant 9.99999974E-6 : f32
    %43 = vector.broadcast %cst_16 : f32 to vector<1x128xf32>
    %44 = arith.addf %41, %43 : vector<1x128xf32>
    %45 = math.rsqrt %44 : vector<1x128xf32>
    %46 = arith.mulf %42, %45 : vector<1x128xf32>
    %47 = vector.extract_strided_slice %1 {offsets = [3, 0], sizes = [1, 128], strides = [1, 1]} : vector<4x128xf32> to vector<1x128xf32>
    %48 = arith.mulf %35, %46 : vector<1x128xf32>
    %49 = arith.subf %47, %48 : vector<1x128xf32>
    %50 = vector.broadcast %46 : vector<1x128xf32> to vector<8x128xf32>
    %51 = arith.mulf %28, %50 : vector<8x128xf32>
    %52 = vector.broadcast %49 : vector<1x128xf32> to vector<8x128xf32>
    %53 = arith.addf %51, %52 : vector<8x128xf32>
    %cst_17 = arith.constant 0.000000e+00 : f32
    %54 = vector.broadcast %cst_17 : f32 to vector<8x128xf32>
    %55 = arith.maximumf %53, %54 : vector<8x128xf32>
    %c0_18 = arith.constant 0 : index
    %c0_19 = arith.constant 0 : index
    %56 = vector.load %arg3[%c0_18, %c0_19] : memref<8x128xf32, #tpu.memory_space<vmem>>, vector<8x128xf32>
    tpu.vector_store %arg3[%c0_18, %c0_19], %55 {strides = array<i32>} : memref<8x128xf32, #tpu.memory_space<vmem>>, vector<8x128xf32>,
    return
  }
}

</mosaic_0001>

<llo_original>
// kernel: feature_extractor_fwd.1
$region0: #{feature_extractor_fwd.1}
  #allocation0 [shape = 'u32[]', space=smem, size = 0x4, offset = 0x4, fixed_abs, tag = 'smem constant byte address 0x4 - core index']
  #allocation1 [shape = 'u32[144,128]{1,0:T(1,128)}', space=vmem, size = 0x12000, scoped, tag = 'internal scratch']
  %s0 = inlined_call_operand.hbm [shape: f32[8,16], index: 0, kind: input, shape index: {}]
  %s1 = inlined_call_operand.hbm [shape: f32[16,128], index: 1, kind: input, shape index: {}]
  %s2 = inlined_call_operand.hbm [shape: f32[4,128], index: 2, kind: input, shape index: {}]
  %s3 = inlined_call_operand.hbm [shape: f32[8,128], index: 3, kind: output, shape index: {}]
  %s4 = sld [smem:[#allocation0]]
  $region34: #{feature_extractor_fwd.1} parent=0
    _
  %s6 = ssub.s32 1, %s4
  %s7 = scalar_select 0, %s6, %s4
  $region1: #{feature_extractor_fwd.1} parent=0
    #allocation2 [shape = 'u8[4096]{0}', space=vmem, size = 0x1000, scoped, tag = 'input window, operand 0, single buffered']
    #allocation3 [shape = 's32[1]{0}', space=sflag, size = 0x4, scoped, tag = 'scoped memory for feature_extractor_fwd.1']
    #allocation4 [shape = 's32[1]{0}', space=sflag, size = 0x4, scoped, tag = 'scoped memory for feature_extractor_fwd.1']
    #allocation5 [shape = 'u8[8192]{0}', space=vmem, size = 0x2000, scoped, tag = 'input window, operand 1, single buffered']
    #allocation6 [shape = 's32[1]{0}', space=sflag, size = 0x4, scoped, tag = 'scoped memory for feature_extractor_fwd.1']
    #allocation7 [shape = 'u8[2048]{0}', space=vmem, size = 0x800, scoped, tag = 'input window, operand 2, single buffered']
    #allocation8 [shape = 'u8[4096]{0}', space=vmem, size = 0x1000, scoped, tag = 'output window, operand 0, single buffered']
    %8 = vsyncpa [#allocation3], 0
    %9 = vsyncpa [#allocation6], 0
    %10 = vsyncpa [#allocation4], 0
    // Predicated region
    $region2: #{feature_extractor_fwd.1} parent=1 // pred_check
      _
    $region3: #{feature_extractor_fwd.1} parent=1 // pred_check_branch
      %12 = sbr.rel (0) target = $region5
    $region4: #{feature_extractor_fwd.1} parent=1 // pred_region
      %s14 = ssub.s32 128, 128
      %15 = vsyncadd [#allocation3], %s14
      %s17 = sshll.u32 [#allocation2], 4
      %s18 = int_to_ptr.vmem [resolvable:$true] %s17
      %20 = dma.hbm_to_vmem [thread:$0]  %s0, 128, %s18, [#allocation3]
    $region5: #{feature_extractor_fwd.1} parent=1 // pred_fallthru
      _
    // Predicated region
    $region6: #{feature_extractor_fwd.1} parent=1 // pred_check
      _
    $region7: #{feature_extractor_fwd.1} parent=1 // pred_check_branch
      %22 = sbr.rel (0) target = $region9
    $region8: #{feature_extractor_fwd.1} parent=1 // pred_region
      %s24 = ssub.s32 256, 256
      %25 = vsyncadd [#allocation6], %s24
      %s26 = sshll.u32 [#allocation5], 4
      %s27 = int_to_ptr.vmem [resolvable:$true] %s26
      %32 = dma.hbm_to_vmem [thread:$0]  %s1, 256, %s27, [#allocation6], 128, 128, 8
    $region9: #{feature_extractor_fwd.1} parent=1 // pred_fallthru
      _
    // Predicated region
    $region10: #{feature_extractor_fwd.1} parent=1 // pred_check
      _
    $region11: #{feature_extractor_fwd.1} parent=1 // pred_check_branch
      %34 = sbr.rel (0) target = $region13
    $region12: #{feature_extractor_fwd.1} parent=1 // pred_region
      %s36 = ssub.s32 64, 64
      %37 = vsyncadd [#allocation6], %s36
      %s39 = sshll.u32 [#allocation7], 4
      %s40 = int_to_ptr.vmem [resolvable:$true] %s39
      %42 = dma.hbm_to_vmem [thread:$0]  %s2, 64, %s40, [#allocation6]
    $region13: #{feature_extractor_fwd.1} parent=1 // pred_fallthru
      _
    // Predicated region
    $region14: #{feature_extractor_fwd.1} parent=1 // pred_check
      _
    $region15: #{feature_extractor_fwd.1} parent=1 // pred_check_branch
      %44 = sbr.rel (0) target = $region17
    $region16: #{feature_extractor_fwd.1} parent=1 // pred_region
      %45 = dma.done [#allocation3], 128
    $region17: #{feature_extractor_fwd.1} parent=1 // pred_fallthru
      _
    // Predicated region
    $region18: #{feature_extractor_fwd.1} parent=1 // pred_check
      _
    $region19: #{feature_extractor_fwd.1} parent=1 // pred_check_branch
      %47 = sbr.rel (0) target = $region21
    $region20: #{feature_extractor_fwd.1} parent=1 // pred_region
      %48 = dma.done [#allocation6], 256
    $region21: #{feature_extractor_fwd.1} parent=1 // pred_fallthru
      _
    // Predicated region
    $region22: #{feature_extractor_fwd.1} parent=1 // pred_check
      _
    $region23: #{feature_extractor_fwd.1} parent=1 // pred_check_branch
      %50 = sbr.rel (0) target = $region25
    $region24: #{feature_extractor_fwd.1} parent=1 // pred_region
      %51 = dma.done [#allocation6], 64
    $region25: #{feature_extractor_fwd.1} parent=1 // pred_fallthru
      _
    %v52 = vld [vmem:[#allocation2] sm:$0xff]
    %v53 = vld [vmem:[#allocation7] sm:$0xf]
    %vm54 = vcmask 130048
    %v55 = vsel %vm54, %v52, 0.0
    %v56 = vrot.slane %v55, 4
    %v57 = vadd.f32 %v55, %v56
    %v58 = vrot.slane %v57, 2
    %v59 = vadd.f32 %v57, %v58
    %v60 = vrot.slane %v59, 1
    %v61 = vadd.f32 %v59, %v60
    %v62 = vmul.f32 %v52, %v52
    %v63 = vsel %vm54, %v62, 0.0
    %v64 = vrot.slane %v63, 4
    %v65 = vadd.f32 %v63, %v64
    %v66 = vrot.slane %v65, 2
    %v67 = vadd.f32 %v65, %v66
    %v68 = vrot.slane %v67, 1
    %v69 = vadd.f32 %v67, %v68
    %v70 = vmul.f32 %v61, 0.125
    %v71 = vmul.f32 %v69, 0.125
    %v72 = vmul.f32 %v70, %v70
    %v73 = vsub.f32 %v71, %v72
    %v74 = vmax.f32 %v73, 0.0
    %v75 = vadd.f32 %v74, 1e-05
    %v76 = vrsqrt.pop %v75
    %v77 = vmul.f32 %v53, %v76
    %v78 = vmul.f32 %v70, %v77
    %v80 = vrot.slane %v78, 7
    %v82 = vsub.f32 %v53, %v80
    %v83 = vlaneseq
    %v84 = vshrl.u32 %v83, 7
    %v85 = vsub.s32 0, %v84
    %v86 = vrot.slane %v77, %v85
    %v87 = vmul.f32 %v52, %v86
    %v88 = vlaneseq
    %v89 = vshrl.u32 %v88, 7
    %v90 = vsub.s32 1, %v89
    %v91 = vrot.slane %v82, %v90
    %v92 = vadd.f32 %v87, %v91
    %v93 = vld [vmem:[#allocation5] sm:$0xff]
    %v94 = vld [vmem:[#allocation5 + $0x8] sm:$0xff]
    %v96 = vsel %vm54, %v92, 0
    %98 = vmatprep.subr.mxu0 0.0
    %99 = vmatpush1.msra.mxu0 0.0
    %100 = vmatprep.subr.mxu0 0.0
    %101 = vmatpush1.msra.mxu0 0.0
    %102 = vmatprep.subr.mxu0 0.0
    %103 = vmatpush1.msra.mxu0 0.0
    %104 = vmatprep.subr.mxu0 0.0
    %105 = vmatpush1.msra.mxu0 0.0
    %106 = vmatprep.subr.mxu0 0.0
    %107 = vmatpush1.msra.mxu0 0.0
    %108 = vmatprep.subr.mxu0 0.0
    %109 = vmatpush1.msra.mxu0 0.0
    %110 = vmatprep.subr.mxu0 0.0
    %111 = vmatpush1.msra.mxu0 0.0
    %112 = vmatprep.subr.mxu0 0.0
    %113 = vmatpush1.msra.mxu0 0.0
    %114 = vmatprep.subr.mxu0 0.0
    %115 = vmatpush1.msra.mxu0 0.0
    %116 = vmatprep.subr.mxu0 0.0
    %117 = vmatpush1.msra.mxu0 0.0
    %118 = vmatprep.subr.mxu0 0.0
    %119 = vmatpush1.msra.mxu0 0.0
    %120 = vmatprep.subr.mxu0 0.0
    %121 = vmatpush1.msra.mxu0 0.0
    %122 = vmatprep.subr.mxu0 0.0
    %123 = vmatpush1.msra.mxu0 0.0
    %124 = vmatprep.subr.mxu0 0.0
    %125 = vmatpush1.msra.mxu0 0.0
    %126 = vmatprep.subr.mxu0 0.0
    %127 = vmatpush1.msra.mxu0 %v94
    %128 = vmatprep.subr.mxu0 0.0
    %129 = vmatpush1.msra.mxu0 %v93
    %130 = vmatprep.subr.mxu0 0.0
    %131 = vmatpush2.msra.mxu0 0.0
    %132 = vmatprep.subr.mxu0 0.0
    %133 = vmatpush2.msra.mxu0 0.0
    %134 = vmatprep.subr.mxu0 0.0
    %135 = vmatpush2.msra.mxu0 0.0
    %136 = vmatprep.subr.mxu0 0.0
    %137 = vmatpush2.msra.mxu0 0.0
    %138 = vmatprep.subr.mxu0 0.0
    %139 = vmatpush2.msra.mxu0 0.0
    %140 = vmatprep.subr.mxu0 0.0
    %141 = vmatpush2.msra.mxu0 0.0
    %142 = vmatprep.subr.mxu0 0.0
    %143 = vmatpush2.msra.mxu0 0.0
    %144 = vmatprep.subr.mxu0 0.0
    %145 = vmatpush2.msra.mxu0 0.0
    %146 = vmatprep.subr.mxu0 0.0
    %147 = vmatpush2.msra.mxu0 0.0
    %148 = vmatprep.subr.mxu0 0.0
    %149 = vmatpush2.msra.mxu0 0.0
    %150 = vmatprep.subr.mxu0 0.0
    %151 = vmatpush2.msra.mxu0 0.0
    %152 = vmatprep.subr.mxu0 0.0
    %153 = vmatpush2.msra.mxu0 0.0
    %154 = vmatprep.subr.mxu0 0.0
    %155 = vmatpush2.msra.mxu0 0.0
    %156 = vmatprep.subr.mxu0 0.0
    %157 = vmatpush2.msra.mxu0 0.0
    %158 = vmatprep.subr.mxu0 0.0
    %159 = vmatpush2.msra.mxu0 0.0
    %160 = vmatprep.subr.mxu0 0.0
    %161 = vmatpush2.msra.mxu0 0.0
    %162 = vmatprep.mubr.f32.mxu0 0.0
    %163 = vmatmul.mubr.f32.gmra.mxu0 %v96
    %v164 = vpop.f32.mrf.mxu0
    %v165 = vadd.f32 0.0, %v164
    %v166 = vpop.f32.mrf.mxu0
    %167 = vdwg.mxu0
    %v168 = vrot.slane %v165, 4
    %v169 = vadd.f32 %v165, %v168
    %v170 = vrot.slane %v169, 2
    %v171 = vadd.f32 %v169, %v170
    %v172 = vrot.slane %v171, 1
    %v173 = vadd.f32 %v171, %v172
    %v174 = vmul.f32 %v165, %v165
    %v175 = vrot.slane %v174, 4
    %v176 = vadd.f32 %v174, %v175
    %v177 = vrot.slane %v176, 2
    %v178 = vadd.f32 %v176, %v177
    %v179 = vrot.slane %v178, 1
    %v180 = vadd.f32 %v178, %v179
    %v181 = vmul.f32 %v173, 0.125
    %v182 = vmul.f32 %v180, 0.125
    %v183 = vmul.f32 %v181, %v181
    %v184 = vsub.f32 %v182, %v183
    %v185 = vmax.f32 %v184, 0.0
    %v186 = vadd.f32 %v185, 1e-05
    %v187 = vrsqrt.pop %v186
    %v188 = vmul.f32 %v53, %v187
    %v189 = vmul.f32 %v181, %v188
    %v191 = vrot.slane %v189, 7
    %v193 = vsub.f32 %v53, %v191
    %v194 = vlaneseq
    %v195 = vshrl.u32 %v194, 7
    %v196 = vsub.s32 2, %v195
    %v197 = vrot.slane %v188, %v196
    %v198 = vmul.f32 %v165, %v197
    %v199 = vlaneseq
    %v200 = vshrl.u32 %v199, 7
    %v201 = vsub.s32 3, %v200
    %v202 = vrot.slane %v193, %v201
    %v203 = vadd.f32 %v198, %v202
    %v204 = vmax.f32 %v203, 0.0
    %205 = vst [vmem:[#allocation8] sm:$0xff] %v204
    // Predicated region
    $region26: #{feature_extractor_fwd.1} parent=1 // pred_check
      _
    $region27: #{feature_extractor_fwd.1} parent=1 // pred_check_branch
      %207 = sbr.rel (0) target = $region29
    $region28: #{feature_extractor_fwd.1} parent=1 // pred_region
      %s209 = ssub.s32 128, 128
      %210 = vsyncadd [#allocation4], %s209
      %s212 = sshll.u32 [#allocation8], 4
      %s213 = int_to_ptr.vmem [resolvable:$true] %s212
      %215 = dma.vmem_to_hbm [thread:$0]  %s213, 128, %s3, [#allocation4]
    $region29: #{feature_extractor_fwd.1} parent=1 // pred_fallthru
      _
    // Predicated region
    $region30: #{feature_extractor_fwd.1} parent=1 // pred_check
      _
    $region31: #{feature_extractor_fwd.1} parent=1 // pred_check_branch
      %217 = sbr.rel (0) target = $region33
    $region32: #{feature_extractor_fwd.1} parent=1 // pred_region
      %218 = dma.done [#allocation4], 128
    $region33: #{feature_extractor_fwd.1} parent=1 // pred_fallthru
      _
    %219 = vsyncpa [#allocation3], 1
    %220 = vsyncpa [#allocation6], 1
    %221 = vsyncpa [#allocation4], 1

</llo_original>
